<compile_context>
chip_gen: v7x
topology: tpu7x:2x2x1
jax: 0.10.0
libtpu: 0.0.40
codegen_flags: <defaults>
</compile_context>

<pallas_src>
import jax
import jax.numpy as jnp
from jax.experimental import pallas as pl
from jax.experimental.pallas import tpu as pltpu

SOLAR_CONSTANT = 1367.0            # defined in the module, unused in forward
ATMOSPHERIC_EXTINCTION = 0.1


# --------------------------------------------------------------------------
# Pallas kernel: out[i, j] = pred_masked[i] * ts[j]  (pure rank-1 store)
# --------------------------------------------------------------------------
def _outer_store_kernel(pred_ref, ts_ref, out_ref):
    # (TM, 1) * (1, TN) -> (TM, TN) broadcast multiply, single unmasked store.
    out_ref[...] = pred_ref[...] * ts_ref[...]


def _round_up(a, m):
    return ((a + m - 1) // m) * m


# --------------------------------------------------------------------------
# Wrapper: O(N) physics + MLP in XLA, O(N^2) broadcast-store in Pallas.
# --------------------------------------------------------------------------
def solar_pinn_forward(x, params, *, tm=512, tn=2048,
                       vmem_limit_bytes=48 * 1024 * 1024):
    """x: (N, 4) float32; params: list of 4 (W, b, s) tuples. Returns (N, N) f32."""
    n = x.shape[0]
    x = x.astype(jnp.float32)
    lat, t, day, slope = x[:, 0], x[:, 1], x[:, 2], x[:, 3]

    # ---- MLP prediction (physics_net), exactly as in the PyTorch reference ----
    h = x
    for idx, (w, b, s) in enumerate(params):
        h = (h @ w.astype(jnp.float32) + b.astype(jnp.float32)) \
            * jax.nn.sigmoid(s.astype(jnp.float32))
        if idx < len(params) - 1:
            h = jnp.tanh(h)
    pred = h                                                       # (N, 1)

    # ---- per-sample physics factors (O(N), hoisted out of the kernel) ----
    decl = 23.45 * jnp.sin(2.0 * jnp.pi * (day - 81.0) / 365.0)
    hour = (t - 12.0) * 15.0
    lat_r, decl_r, hour_r = jnp.deg2rad(lat), jnp.deg2rad(decl), jnp.deg2rad(hour)
    cos_z = jnp.clip(jnp.sin(lat_r) * jnp.sin(decl_r)
                     + jnp.cos(lat_r) * jnp.cos(decl_r) * jnp.cos(hour_r),
                     -1.0, 1.0)
    zenith = jnp.arccos(cos_z)
    zenith_deg = jnp.rad2deg(zenith)
    denom = jnp.cos(zenith) + 0.50572 * (96.07995 - zenith_deg) ** (-1.6364)
    air_mass = jnp.where(zenith_deg < 90.0, 1.0 / denom, jnp.inf)
    transmission = jnp.exp(-ATMOSPHERIC_EXTINCTION * air_mass)     # exp(-inf) -> 0
    slope_r = jnp.deg2rad(slope)
    surface = jnp.clip(jnp.cos(slope_r) * jnp.cos(zenith)
                       + jnp.sin(slope_r) * jnp.sin(zenith), 0.0, 1.0)
    ts = transmission * surface                                    # (N,)

    # ---- day mask (sunrise/sunset). The reference's polar day/night branches
    #      compare the already-clamped cos_hour_angle strictly against +/-1 and
    #      are therefore dead code; intentionally omitted. ----
    cos_ha = jnp.clip(-jnp.tan(lat_r) * jnp.tan(decl_r), -1.0, 1.0)
    offset = jnp.rad2deg(jnp.arccos(cos_ha)) / 15.0
    day_mask = (t >= 12.0 - offset) & (t <= 12.0 + offset)         # (N,)
    pred_masked = jnp.where(day_mask[:, None], pred, 0.0)          # (N, 1)

    # ---- tiling / padding: rows multiple of 8 (sublanes), cols multiple of
    #      128 (lanes) so output stores are full, unmasked vst's. ----
    tm = min(tm, _round_up(n, 8))
    tn = min(tn, _round_up(n, 128))
    np_r = _round_up(n, tm)
    np_c = _round_up(n, tn)

    pred_pad = jnp.pad(pred_masked, ((0, np_r - n), (0, 0)))       # (np_r, 1)
    ts_pad = jnp.pad(ts, (0, np_c - n)).reshape(1, np_c)           # (1, np_c)

    grid = (np_r // tm, np_c // tn)

    cost = pl.CostEstimate(
        flops=np_r * np_c,                                         # one mul/elem
        transcendentals=0,
        bytes_accessed=4 * (np_r * np_c + np_r + np_c),
    )

    out = pl.pallas_call(
        _outer_store_kernel,
        out_shape=jax.ShapeDtypeStruct((np_r, np_c), jnp.float32),
        grid_spec=pltpu.PrefetchScalarGridSpec(
            num_scalar_prefetch=0,
            grid=grid,
            in_specs=[
                pl.BlockSpec((tm, 1), lambda i, j: (i, 0)),        # masked pred column
                pl.BlockSpec((1, tn), lambda i, j: (0, j)),        # T*S lane row
            ],
            out_specs=pl.BlockSpec((tm, tn), lambda i, j: (i, j)),
        ),
        compiler_params=pltpu.CompilerParams(
            # No cross-iteration carry -> both axes embarrassingly parallel
            # (lets v7x shard the store stream over both TensorCores).
            dimension_semantics=("parallel", "parallel"),
            vmem_limit_bytes=vmem_limit_bytes,
        ),
        cost_estimate=cost,
    )(pred_pad, ts_pad)

    return out[:n, :n]


# --------------------------------------------------------------------------
# Deterministic synthetic parameters (W stored as (in, out); b, s as (1, out)).
# --------------------------------------------------------------------------
def init_params(key, input_dim=4):
    layer_dims = [(input_dim, 128), (128, 256), (256, 128), (128, 1)]
    params = []
    for fin, fout in layer_dims:
        key, kw, kb, ks = jax.random.split(key, 4)
        w = jax.random.normal(kw, (fin, fout), jnp.float32) / jnp.sqrt(jnp.float32(fin))
        b = 0.01 * jax.random.normal(kb, (1, fout), jnp.float32)
        s = jax.random.normal(ks, (1, fout), jnp.float32)        # "physics_weights"
        params.append((w, b, s))
    return params


def _reference_forward(x, params):
    """Pure-JAX reproduction of the PyTorch forward (for correctness check)."""
    lat, t, day, slope = x[:, 0], x[:, 1], x[:, 2], x[:, 3]
    h = x
    for idx, (w, b, s) in enumerate(params):
        h = (h @ w + b) * jax.nn.sigmoid(s)
        if idx < len(params) - 1:
            h = jnp.tanh(h)
    pred = h                                                      # (N, 1)
    decl = 23.45 * jnp.sin(2 * jnp.pi * (day - 81.0) / 365.0)
    hour = (t - 12.0) * 15.0
    lat_r, decl_r, hour_r = jnp.deg2rad(lat), jnp.deg2rad(decl), jnp.deg2rad(hour)
    cos_z = jnp.clip(jnp.sin(lat_r) * jnp.sin(decl_r)
                     + jnp.cos(lat_r) * jnp.cos(decl_r) * jnp.cos(hour_r), -1.0, 1.0)
    zen = jnp.arccos(cos_z)
    zen_d = jnp.rad2deg(zen)
    denom = jnp.cos(zen) + 0.50572 * (96.07995 - zen_d) ** (-1.6364)
    air = jnp.where(zen_d < 90.0, 1.0 / denom, jnp.inf)
    trans = jnp.exp(-ATMOSPHERIC_EXTINCTION * air)
    slope_r = jnp.deg2rad(slope)
    surf = jnp.clip(jnp.cos(slope_r) * jnp.cos(zen)
                    + jnp.sin(slope_r) * jnp.sin(zen), 0.0, 1.0)
    cos_ha = jnp.clip(-jnp.tan(lat_r) * jnp.tan(decl_r), -1.0, 1.0)
    offset = jnp.rad2deg(jnp.arccos(cos_ha)) / 15.0
    mask = (t >= 12.0 - offset) & (t <= 12.0 + offset)
    constrained = pred * trans * surf                             # (N,1)*(N,)*(N,) -> (N,N)
    return jnp.where(mask.reshape(-1, 1), constrained, 0.0)


if __name__ == "__main__":
    key = jax.random.PRNGKey(0)
    k_params, k_lat, k_time, k_day, k_slope = jax.random.split(key, 5)

    params = init_params(k_params, input_dim=4)

    n = 8
    latitude = jax.random.uniform(k_lat, (n,), jnp.float32, -60.0, 60.0)
    time_h = jax.random.uniform(k_time, (n,), jnp.float32, 0.0, 24.0)
    day = jax.random.uniform(k_day, (n,), jnp.float32, 1.0, 365.0)
    slope = jax.random.uniform(k_slope, (n,), jnp.float32, 0.0, 45.0)
    x = jnp.stack([latitude, time_h, day, slope], axis=1)         # (8, 4)

    fwd = jax.jit(lambda xi: solar_pinn_forward(xi, params))
    out = jax.block_until_ready(fwd(x))
    assert out.shape == (n, n) and out.dtype == jnp.float32

    ref = _reference_forward(x, params)
    # Tighter tolerance than before: only difference vs the reference is the
    # associativity of the pred*T*S product (folded as pred*(T*S)).
    assert jnp.allclose(out, ref, rtol=1e-5, atol=1e-6), "mismatch vs pure-JAX reference"

    print("KERNEL_OK")
</pallas_src>

<mosaic_0001>
module attributes {stable_mosaic.version = 11 : i64} {
  func.func @_outer_store_kernel(%arg0: i32, %arg1: i32, %arg2: memref<8x1xf32, #tpu.memory_space<vmem>>, %arg3: memref<1x128xf32, #tpu.memory_space<vmem>>, %arg4: memref<8x128xf32, #tpu.memory_space<vmem>>) attributes {dimension_semantics = [#tpu.dimension_semantics<parallel>, #tpu.dimension_semantics<parallel>], iteration_bounds = array<i64: 1, 1>, scalar_prefetch = 0 : i64, scratch_operands = 0 : i64, tpu.core_type = #tpu.core_type<tc>, window_params = [{transform_indices = @transform_0, window_bounds = array<i64: 8, 1>}, {transform_indices = @transform_1, window_bounds = array<i64: 1, 128>}, {transform_indices = @transform_2, window_bounds = array<i64: 8, 128>}]} {
    %c0 = arith.constant 0 : index
    %c0_0 = arith.constant 0 : index
    %0 = vector.load %arg2[%c0, %c0_0] : memref<8x1xf32, #tpu.memory_space<vmem>>, vector<8x1xf32>
    %c0_1 = arith.constant 0 : index
    %c0_2 = arith.constant 0 : index
    %1 = vector.load %arg3[%c0_1, %c0_2] : memref<1x128xf32, #tpu.memory_space<vmem>>, vector<1x128xf32>
    %2 = vector.broadcast %0 : vector<8x1xf32> to vector<8x128xf32>
    %3 = vector.broadcast %1 : vector<1x128xf32> to vector<8x128xf32>
    %4 = arith.mulf %2, %3 : vector<8x128xf32>
    %c0_3 = arith.constant 0 : index
    %c0_4 = arith.constant 0 : index
    %5 = vector.load %arg4[%c0_3, %c0_4] : memref<8x128xf32, #tpu.memory_space<vmem>>, vector<8x128xf32>
    tpu.vector_store %arg4[%c0_3, %c0_4], %4 {strides = array<i32>} : memref<8x128xf32, #tpu.memory_space<vmem>>, vector<8x128xf32>,
    return
  }
  func.func @transform_0(%arg0: i32, %arg1: i32) -> (i32, i32) {
    %c0_i32 = arith.constant 0 : i32
    %c0_i32_0 = arith.constant 0 : i32
    return %arg0, %c0_i32 : i32, i32
  }
  func.func @transform_1(%arg0: i32, %arg1: i32) -> (i32, i32) {
    %c0_i32 = arith.constant 0 : i32
    %c0_i32_0 = arith.constant 0 : i32
    return %c0_i32, %arg1 : i32, i32
  }
  func.func @transform_2(%arg0: i32, %arg1: i32) -> (i32, i32) {
    %c0_i32 = arith.constant 0 : i32
    return %arg0, %arg1 : i32, i32
  }
}

</mosaic_0001>

<llo_original>
// kernel: _lambda_.1
$region0: #{_lambda_.1}
  #allocation0 [shape = 'u32[]', space=smem, size = 0x4, offset = 0x4, fixed_abs, tag = 'smem constant byte address 0x4 - core index']
  #allocation1 [shape = 'u32[144,128]{1,0:T(1,128)}', space=vmem, size = 0x12000, scoped, tag = 'internal scratch']
  %s0 = inlined_call_operand.vmem [shape: f32[8,1], index: 0, kind: input, shape index: {}]
  %s1 = inlined_call_operand.vmem [shape: f32[1,128], index: 1, kind: input, shape index: {}]
  %s2 = inlined_call_operand.hbm [shape: f32[8,128], index: 2, kind: output, shape index: {}]
  %s3 = sld [smem:[#allocation0]]
  $region18: #{_lambda_.1} parent=0
    _
  %s5 = ssub.s32 1, %s3
  %s6 = scalar_select 0, %s5, %s3
  $region1: #{_lambda_.1} parent=0
    #allocation2 [shape = 'u8[4096]{0}', space=vmem, size = 0x1000, scoped, tag = 'output window, operand 0, single buffered']
    #allocation3 [shape = 's32[1]{0}', space=sflag, size = 0x4, scoped, tag = 'scoped memory for _lambda_.1']
    %7 = vsyncpa [#allocation3], 0
    // Predicated region
    $region2: #{_lambda_.1} parent=1 // pred_check
      _
    $region3: #{_lambda_.1} parent=1 // pred_check_branch
      %9 = sbr.rel (0) target = $region5
    $region4: #{_lambda_.1} parent=1 // pred_region
      _
    $region5: #{_lambda_.1} parent=1 // pred_fallthru
      _
    // Predicated region
    $region6: #{_lambda_.1} parent=1 // pred_check
      _
    $region7: #{_lambda_.1} parent=1 // pred_check_branch
      %11 = sbr.rel (0) target = $region9
    $region8: #{_lambda_.1} parent=1 // pred_region
      _
    $region9: #{_lambda_.1} parent=1 // pred_fallthru
      _
    %v12 = vld [vmem:[%s0] sm:$0xff]
    %v13 = vld [vmem:[%s1] sm:$0x1]
    %15 = vset.pattern.permute.xlu0 0
    %16 = vperm.xlu0 %15, %v12
    %v17 = vpop.permute.xlu0 %16
    %v20 = vlaneseq
    %v21 = vshrl.u32 %v20, 7
    %v22 = vsub.s32 0, %v21
    %v23 = vrot.slane %v13, %v22
    %v25 = vmul.f32 %v17, %v23
    %26 = vst [vmem:[#allocation2] sm:$0xff] %v25
    // Predicated region
    $region10: #{_lambda_.1} parent=1 // pred_check
      _
    $region11: #{_lambda_.1} parent=1 // pred_check_branch
      %28 = sbr.rel (0) target = $region13
    $region12: #{_lambda_.1} parent=1 // pred_region
      %s30 = ssub.s32 128, 128
      %31 = vsyncadd [#allocation3], %s30
      %s33 = sshll.u32 [#allocation2], 4
      %s34 = int_to_ptr.vmem [resolvable:$true] %s33
      %36 = dma.vmem_to_hbm [thread:$0]  %s34, 128, %s2, [#allocation3]
    $region13: #{_lambda_.1} parent=1 // pred_fallthru
      _
    // Predicated region
    $region14: #{_lambda_.1} parent=1 // pred_check
      _
    $region15: #{_lambda_.1} parent=1 // pred_check_branch
      %38 = sbr.rel (0) target = $region17
    $region16: #{_lambda_.1} parent=1 // pred_region
      %39 = dma.done [#allocation3], 128
    $region17: #{_lambda_.1} parent=1 // pred_fallthru
      _
    %40 = vsyncpa [#allocation3], 1

</llo_original>
